<compile_context>
chip_gen: v7x
topology: tpu7x:2x2x1
jax: 0.10.0
libtpu: 0.0.40
codegen_flags: <defaults>
</compile_context>

<pallas_src>
import math

import jax
import jax.numpy as jnp
from jax.experimental import pallas as pl
from jax.experimental.pallas import tpu as pltpu

_LANES = 128
_SUBLANES = 8
_TARGET_TILE_BYTES = 4 * 1024 * 1024      # per-block buffer target (~4 MiB)
_SMALL_BYTES = 1 * 1024 * 1024            # single-block fast path (128-aligned)
_SMALL_UNALIGNED_BYTES = 256 * 1024       # single-block fast path (ragged)
_VMEM_LIMIT_BYTES = 32 * 1024 * 1024      # lifts v5e's 16 MiB default; <= v6e/v7x


def _copy_kernel(x_ref, o_ref):
    # Identity copy of one VMEM tile: the entire "hot path" of a reshape.
    o_ref[...] = x_ref[...]


def _resolve_new_shape(total, new_shape):
    new_shape = tuple(int(d) for d in new_shape)
    if any(d == -1 for d in new_shape):
        known = 1
        for d in new_shape:
            if d != -1:
                known *= d
        assert known != 0 and total % known == 0, "cannot infer -1 dimension"
        new_shape = tuple(total // known if d == -1 else d for d in new_shape)
    assert math.prod(new_shape) == total, (
        f"cannot reshape array of size {total} into shape {new_shape}")
    return new_shape


def _choose_width(total):
    # Widest lane-dense row that divides the flat size (fewer, wider DMAs).
    for w in (1024, 512, 256, 128):
        if total % w == 0:
            return w
    return None


def _pallas_copy_2d(x2d, tile_rows):
    rows, width = x2d.shape
    grid_len = pl.cdiv(rows, tile_rows)
    return pl.pallas_call(
        _copy_kernel,
        out_shape=jax.ShapeDtypeStruct((rows, width), x2d.dtype),
        grid_spec=pltpu.PrefetchScalarGridSpec(
            num_scalar_prefetch=0,
            grid=(grid_len,),
            in_specs=[pl.BlockSpec((tile_rows, width), lambda i: (i, 0))],
            out_specs=pl.BlockSpec((tile_rows, width), lambda i: (i, 0)),
        ),
        compiler_params=pltpu.CompilerParams(
            dimension_semantics=("parallel",),
            vmem_limit_bytes=_VMEM_LIMIT_BYTES,
        ),
    )(x2d)


def pallas_reshape(x, new_shape):
    """Equivalent of torch.Tensor.reshape(new_shape); copy done in Pallas."""
    total = math.prod(x.shape) if x.shape else 1
    new_shape = _resolve_new_shape(total, new_shape)
    if total == 0:
        return jnp.reshape(x, new_shape)

    itemsize = jnp.dtype(x.dtype).itemsize
    total_bytes = total * itemsize
    aligned = (total % _LANES == 0)

    # Flattening a contiguous array is a metadata-only op in XLA.
    flat = jnp.reshape(x, (total,))

    # ---- small fast path: one full-array block, single grid step ----------
    if (aligned and total_bytes <= _SMALL_BYTES) or \
       (not aligned and total_bytes <= _SMALL_UNALIGNED_BYTES):
        if aligned:
            x2d = jnp.reshape(flat, (total // _LANES, _LANES))
        else:
            x2d = jnp.reshape(flat, (1, total))  # full-dim block, masked stores
        out2d = _pallas_copy_2d(x2d, tile_rows=x2d.shape[0])
        return jnp.reshape(out2d, new_shape)

    # ---- large but not 128-divisible: extremely rare for this model -------
    if not aligned:
        # TODO(synk): a masked-tail Pallas path could cover this; a plain
        # reshape is a pure metadata op and strictly cheaper, so use it.
        return jnp.reshape(x, new_shape)

    # ---- tiled grid path (multi-MiB, lane-dense blocks; no pad/slice) -----
    width = _choose_width(total)
    rows = total // width
    # dtype-aware sublane packing: 8 (f32), 16 (bf16), 32 (int8/fp8).
    pack = max(_SUBLANES, 32 // itemsize)
    tile_rows = max(pack,
                    (_TARGET_TILE_BYTES // (width * itemsize)) // pack * pack)
    if tile_rows >= rows:
        tile_rows = rows  # single full-dim block
    x2d = jnp.reshape(flat, (rows, width))
    out2d = _pallas_copy_2d(x2d, tile_rows=tile_rows)
    return jnp.reshape(out2d, new_shape)


class Reshape:
    """JAX/Pallas port of the PyTorch Reshape helper module."""

    def __init__(self, new_shape):
        self.new_shape = tuple(new_shape)

    def __call__(self, x):
        return pallas_reshape(x, self.new_shape)


if __name__ == "__main__":
    key = jax.random.PRNGKey(0)

    # NCHW input, as fed inside the AE model (small-tensor fast path).
    B, C, H, W = 2, 4, 16, 16
    x = jax.random.normal(key, (B, C, H, W), dtype=jnp.float32)
    module = Reshape((B, C * H * W))
    y = jax.block_until_ready(module(x))
    ref = jnp.reshape(x, (B, C * H * W))
    assert y.shape == ref.shape, (y.shape, ref.shape)
    assert y.dtype == ref.dtype
    assert bool(jnp.all(y == ref))

    # -1 dimension and a non-128-divisible total (ragged single-block path).
    x2 = jax.random.normal(jax.random.PRNGKey(1), (3, 5, 7), dtype=jnp.float32)
    y2 = jax.block_until_ready(Reshape((-1, 7))(x2))
    assert bool(jnp.all(y2 == jnp.reshape(x2, (-1, 7))))

    # Larger input to exercise the tiled (multi-MiB block) grid path.
    x3 = jax.random.normal(jax.random.PRNGKey(2), (8, 64, 32, 32),
                           dtype=jnp.float32)
    y3 = jax.block_until_ready(Reshape((8, 64, 32 * 32))(x3))
    assert bool(jnp.all(y3 == jnp.reshape(x3, (8, 64, 32 * 32))))

    print("KERNEL_OK")
</pallas_src>

<mosaic_0001>
module attributes {stable_mosaic.version = 11 : i64} {
  func.func @_copy_kernel(%arg0: i32, %arg1: memref<16x128xf32, #tpu.memory_space<vmem>>, %arg2: memref<16x128xf32, #tpu.memory_space<vmem>>) attributes {dimension_semantics = [#tpu.dimension_semantics<parallel>], iteration_bounds = array<i64: 1>, scalar_prefetch = 0 : i64, scratch_operands = 0 : i64, tpu.core_type = #tpu.core_type<tc>, window_params = [{transform_indices = @transform_0, window_bounds = array<i64: 16, 128>}, {transform_indices = @transform_1, window_bounds = array<i64: 16, 128>}]} {
    %c0 = arith.constant 0 : index
    %c0_0 = arith.constant 0 : index
    %0 = vector.load %arg1[%c0, %c0_0] : memref<16x128xf32, #tpu.memory_space<vmem>>, vector<16x128xf32>
    %c0_1 = arith.constant 0 : index
    %c0_2 = arith.constant 0 : index
    %1 = vector.load %arg2[%c0_1, %c0_2] : memref<16x128xf32, #tpu.memory_space<vmem>>, vector<16x128xf32>
    tpu.vector_store %arg2[%c0_1, %c0_2], %0 {strides = array<i32>} : memref<16x128xf32, #tpu.memory_space<vmem>>, vector<16x128xf32>,
    return
  }
  func.func @transform_0(%arg0: i32) -> (i32, i32) {
    %c0_i32 = arith.constant 0 : i32
    %c0_i32_0 = arith.constant 0 : i32
    return %arg0, %c0_i32 : i32, i32
  }
  func.func @transform_1(%arg0: i32) -> (i32, i32) {
    %c0_i32 = arith.constant 0 : i32
    %c0_i32_0 = arith.constant 0 : i32
    return %arg0, %c0_i32 : i32, i32
  }
}

</mosaic_0001>

<llo_original>
// kernel: tpu_custom_call.1
$region0: #{tpu_custom_call.1}
  #allocation0 [shape = 'u32[]', space=smem, size = 0x4, offset = 0x4, fixed_abs, tag = 'smem constant byte address 0x4 - core index']
  #allocation1 [shape = 'u32[144,128]{1,0:T(1,128)}', space=vmem, size = 0x12000, scoped, tag = 'internal scratch']
  %s0 = inlined_call_operand.hbm [shape: f32[16,128], index: 0, kind: input, shape index: {}]
  %s1 = inlined_call_operand.hbm [shape: f32[16,128], index: 1, kind: output, shape index: {}]
  %s2 = sld [smem:[#allocation0]]
  $region18: #{tpu_custom_call.1} parent=0
    _
  %s4 = ssub.s32 1, %s2
  %s5 = scalar_select 0, %s4, %s2
  $region1: #{tpu_custom_call.1} parent=0
    #allocation2 [shape = 'u8[8192]{0}', space=vmem, size = 0x2000, scoped, tag = 'input window, operand 0, single buffered']
    #allocation3 [shape = 's32[1]{0}', space=sflag, size = 0x4, scoped, tag = 'scoped memory for tpu_custom_call.1']
    #allocation4 [shape = 's32[1]{0}', space=sflag, size = 0x4, scoped, tag = 'scoped memory for tpu_custom_call.1']
    #allocation5 [shape = 'u8[8192]{0}', space=vmem, size = 0x2000, scoped, tag = 'output window, operand 0, single buffered']
    %6 = vsyncpa [#allocation3], 0
    %7 = vsyncpa [#allocation4], 0
    // Predicated region
    $region2: #{tpu_custom_call.1} parent=1 // pred_check
      _
    $region3: #{tpu_custom_call.1} parent=1 // pred_check_branch
      %9 = sbr.rel (0) target = $region5
    $region4: #{tpu_custom_call.1} parent=1 // pred_region
      %s11 = ssub.s32 256, 256
      %12 = vsyncadd [#allocation3], %s11
      %s13 = sshll.u32 [#allocation2], 4
      %s14 = int_to_ptr.vmem [resolvable:$true] %s13
      %19 = dma.hbm_to_vmem [thread:$0]  %s0, 256, %s14, [#allocation3], 128, 128, 8
    $region5: #{tpu_custom_call.1} parent=1 // pred_fallthru
      _
    // Predicated region
    $region6: #{tpu_custom_call.1} parent=1 // pred_check
      _
    $region7: #{tpu_custom_call.1} parent=1 // pred_check_branch
      %21 = sbr.rel (0) target = $region9
    $region8: #{tpu_custom_call.1} parent=1 // pred_region
      %22 = dma.done [#allocation3], 256
    $region9: #{tpu_custom_call.1} parent=1 // pred_fallthru
      _
    %v23 = vld [vmem:[#allocation2] sm:$0xff]
    %v24 = vld [vmem:[#allocation2 + $0x8] sm:$0xff]
    %25 = vst [vmem:[#allocation5] sm:$0xff] %v23
    %26 = vst [vmem:[#allocation5 + $0x8] sm:$0xff] %v24
    // Predicated region
    $region10: #{tpu_custom_call.1} parent=1 // pred_check
      _
    $region11: #{tpu_custom_call.1} parent=1 // pred_check_branch
      %28 = sbr.rel (0) target = $region13
    $region12: #{tpu_custom_call.1} parent=1 // pred_region
      %s30 = ssub.s32 256, 256
      %31 = vsyncadd [#allocation4], %s30
      %s32 = sshll.u32 [#allocation5], 4
      %s33 = int_to_ptr.vmem [resolvable:$true] %s32
      %38 = dma.vmem_to_hbm [thread:$0]  %s33, 256, %s1, [#allocation4], 128, 128, 8
    $region13: #{tpu_custom_call.1} parent=1 // pred_fallthru
      _
    // Predicated region
    $region14: #{tpu_custom_call.1} parent=1 // pred_check
      _
    $region15: #{tpu_custom_call.1} parent=1 // pred_check_branch
      %40 = sbr.rel (0) target = $region17
    $region16: #{tpu_custom_call.1} parent=1 // pred_region
      %41 = dma.done [#allocation4], 256
    $region17: #{tpu_custom_call.1} parent=1 // pred_fallthru
      _
    %42 = vsyncpa [#allocation3], 1
    %43 = vsyncpa [#allocation4], 1

</llo_original>
